<compile_context>
chip_gen: v5e
topology: v5e:2x2
jax: 0.10.0
libtpu: 0.0.40
codegen_flags: <defaults>
</compile_context>

<pallas_src>
from functools import partial

import jax
import jax.numpy as jnp
from jax.experimental import pallas as pl
from jax.experimental.pallas import tpu as pltpu  # used for production-scale tiling (see TODO)


# --------------------------- fused CFG-model kernel ---------------------------
def _make_cfg_kernel(s):
    s = float(s)

    def kernel(x_ref, x2_ref, add_base_ref, add_cond_ref, mask_ref,
               wx_ref, wx2_ref, wout_ref, b2_ref, out_ref):
        # Input projections: (B*T, D) @ (D, H), bf16 inputs -> f32 accumulation on the MXU.
        h_base = (jnp.dot(x_ref[...], wx_ref[...], preferred_element_type=jnp.float32)
                  + jnp.dot(x2_ref[...], wx2_ref[...], preferred_element_type=jnp.float32)
                  + add_base_ref[...])                     # + (t_emb + b1), per row
        h_cond = h_base + add_cond_ref[...]                # + cond @ Wc (exactly 0 for uncond)

        # CFG mix before the output projection (the model tail is linear in the activations).
        # TODO(synk): PyTorch F.gelu default is exact erf; tanh approximation kept here for
        #             guaranteed EUP lowering on TPU.
        a_mix = (s * jax.nn.gelu(h_cond, approximate=True)
                 + (1.0 - s) * jax.nn.gelu(h_base, approximate=True))        # f32, VPU

        # Single output projection for the already-mixed activations.
        o = jnp.dot(a_mix.astype(jnp.bfloat16), wout_ref[...],
                    preferred_element_type=jnp.float32)                      # (B*T, D)

        # Bias + mask in f32 on the VPU, then store.
        # TODO(synk): output last dim D=32 < 128 lanes -> masked vst; moot at these toy shapes
        #             (and if production D >= 128).
        out_ref[...] = ((o + b2_ref[...]) * mask_ref[...]).astype(out_ref.dtype)

    return kernel


def cfg_forward(xf, x2f, add_base, add_cond, maskf, wx, wx2, wout, b2, s):
    """Single-step fused kernel: model on both CFG branches + s*cond + (1-s)*uncond mix."""
    M, D = xf.shape
    # No grid: one kernel invocation, whole arrays resident in VMEM (default BlockSpecs).
    # TODO(synk): for production T/D, add a row-tile grid axis over M (512-1024 rows/tile) and
    #             set pltpu.CompilerParams(vmem_limit_bytes=...) to fit v7x's 64 MiB VMEM.
    return pl.pallas_call(
        _make_cfg_kernel(s),
        out_shape=jax.ShapeDtypeStruct((M, D), jnp.float32),
    )(xf, x2f, add_base, add_cond, maskf, wx, wx2, wout, b2)


# --------------------------- jitted host-side wrapper --------------------------
@partial(jax.jit, static_argnames=("s",))
def _cfg_apply(x, x2, timesteps, cond, mask, t_table_b1, wx, wx2, wc, wout, b2, *, s):
    B, T, D = x.shape
    M = B * T
    # Cast matmul inputs to bf16 once, wrapper-side (they are cast before the dot anyway).
    xf = x.reshape(M, D).astype(jnp.bfloat16)
    x2f = x2.reshape(M, D).astype(jnp.bfloat16)
    # Timestep-embedding gather (b1 already folded into the table) and cond projection are
    # tiny XLA ops; expand to per-row (M, H) add terms so the kernel is a pure 2-D pipeline.
    temb = jnp.take(t_table_b1, timesteps, axis=0)          # (B, H) f32
    add_base = jnp.repeat(temb, T, axis=0)                  # (M, H)
    add_cond = jnp.repeat(jnp.dot(cond, wc), T, axis=0)     # (M, H)  (uncond branch adds 0)
    maskf = mask.reshape(M, 1).astype(jnp.float32)          # (M, 1)
    out = cfg_forward(xf, x2f, add_base, add_cond, maskf, wx, wx2, wout, b2, s)
    return out.reshape(B, T, D)


# --------------------------- CFG sampler wrapper ------------------------------
class ClassifierFreeSampleModelX2:
    def __init__(self, params, cfg_scale):
        self.s = float(cfg_scale)
        # MXU weights in bf16; small per-row terms stay f32.
        self.wx = params["wx"].astype(jnp.bfloat16)
        self.wx2 = params["wx2"].astype(jnp.bfloat16)
        self.wout = params["wout"].astype(jnp.bfloat16)
        self.wc = params["wc"].astype(jnp.float32)          # applied wrapper-side (tiny dot)
        self.b2 = params["b2"].astype(jnp.float32)
        # Fold b1 into the timestep-embedding table.
        self.t_table_b1 = (params["t_table"] + params["b1"]).astype(jnp.float32)
        self.C = params["wc"].shape[0]

    def __call__(self, x, x2, timesteps, cond=None, mask=None):
        B, T, D = x.shape
        if cond is None:
            cond = jnp.zeros((B, self.C), jnp.float32)
        if mask is None:
            mask = jnp.ones((B, T), jnp.float32)
        return _cfg_apply(x.astype(jnp.float32), x2.astype(jnp.float32),
                          timesteps.astype(jnp.int32), cond.astype(jnp.float32),
                          mask.astype(jnp.float32), self.t_table_b1,
                          self.wx, self.wx2, self.wc, self.wout, self.b2, s=self.s)


# -------------- pure-JAX f32 reference (original unfused CFG path) -------------
def _reference(params, s, x, x2, timesteps, cond, mask):
    """Emulates the PyTorch wrapper exactly: duplicate batch -> model on 2B -> CFG mix.
    Kept in full f32 so the test validates against the original numerics (the kernel's
    bf16 MXU inputs introduce ~1e-3-level deviations, covered by the tolerance)."""
    B = x.shape[0]
    xc = jnp.concatenate([x, x], axis=0)
    x2c = jnp.concatenate([x2, x2], axis=0)
    tc = jnp.concatenate([timesteps, timesteps], axis=0)
    cc = jnp.concatenate([cond, jnp.zeros_like(cond)], axis=0)
    mc = jnp.concatenate([mask, mask], axis=0)[..., None]
    temb = jnp.take(params["t_table"], tc, axis=0)[:, None, :]          # (2B, 1, H)
    h = (jnp.einsum("btd,dh->bth", xc, params["wx"])
         + jnp.einsum("btd,dh->bth", x2c, params["wx2"])
         + jnp.einsum("bc,ch->bh", cc, params["wc"])[:, None, :]
         + temb + params["b1"][None])
    a = jax.nn.gelu(h, approximate=True)
    out = mc * (jnp.einsum("bth,hd->btd", a, params["wout"]) + params["b2"][None])
    return s * out[:B] + (1.0 - s) * out[B:]


# ----------------------------------- main -------------------------------------
if __name__ == "__main__":
    B, T, D, H, C = 2, 8, 32, 64, 16
    NUM_TIMESTEPS = 100

    key = jax.random.PRNGKey(0)
    keys = jax.random.split(key, 10)

    params = {
        "wx":      jax.random.normal(keys[0], (D, H), jnp.float32) * 0.05,
        "wx2":     jax.random.normal(keys[1], (D, H), jnp.float32) * 0.05,
        "wc":      jax.random.normal(keys[2], (C, H), jnp.float32) * 0.05,
        "b1":      jnp.zeros((1, H), jnp.float32),
        "wout":    jax.random.normal(keys[3], (H, D), jnp.float32) * 0.05,
        "b2":      jnp.zeros((1, D), jnp.float32),
        "t_table": jax.random.normal(keys[4], (NUM_TIMESTEPS, H), jnp.float32) * 0.05,
    }

    x = jax.random.normal(keys[5], (B, T, D), jnp.float32)
    x2 = jax.random.normal(keys[6], (B, T, D), jnp.float32)
    timesteps = jax.random.randint(keys[7], (B,), 0, NUM_TIMESTEPS, jnp.int32)
    cond = jax.random.normal(keys[8], (B, C), jnp.float32)
    mask = (jax.random.uniform(keys[9], (B, T)) > 0.2).astype(jnp.float32)

    sampler = ClassifierFreeSampleModelX2(params, cfg_scale=2.5)
    cfg_out = jax.block_until_ready(sampler(x, x2, timesteps, cond=cond, mask=mask))

    assert cfg_out.shape == (B, T, D), cfg_out.shape
    assert bool(jnp.all(jnp.isfinite(cfg_out)))

    ref = _reference(params, 2.5, x, x2, timesteps, cond, mask)
    max_err = float(jnp.max(jnp.abs(cfg_out - ref)))
    assert bool(jnp.allclose(cfg_out, ref, rtol=1e-2, atol=1e-2)), max_err

    print("KERNEL_OK")
</pallas_src>

<mosaic_0001>
module attributes {stable_mosaic.version = 11 : i64} {
  func.func @kernel(%arg0: memref<16x32xbf16, #tpu.memory_space<vmem>>, %arg1: memref<16x32xbf16, #tpu.memory_space<vmem>>, %arg2: memref<16x64xf32, #tpu.memory_space<vmem>>, %arg3: memref<16x64xf32, #tpu.memory_space<vmem>>, %arg4: memref<16x1xf32, #tpu.memory_space<vmem>>, %arg5: memref<32x64xbf16, #tpu.memory_space<vmem>>, %arg6: memref<32x64xbf16, #tpu.memory_space<vmem>>, %arg7: memref<64x32xbf16, #tpu.memory_space<vmem>>, %arg8: memref<1x32xf32, #tpu.memory_space<vmem>>, %arg9: memref<16x32xf32, #tpu.memory_space<vmem>>) attributes {dimension_semantics = [], scalar_prefetch = 0 : i64, scratch_operands = 0 : i64, tpu.core_type = #tpu.core_type<tc>} {
    %c0 = arith.constant 0 : index
    %c0_0 = arith.constant 0 : index
    %0 = vector.load %arg0[%c0, %c0_0] : memref<16x32xbf16, #tpu.memory_space<vmem>>, vector<16x32xbf16>
    %c0_1 = arith.constant 0 : index
    %c0_2 = arith.constant 0 : index
    %1 = vector.load %arg5[%c0_1, %c0_2] : memref<32x64xbf16, #tpu.memory_space<vmem>>, vector<32x64xbf16>
    %cst = arith.constant dense<0.000000e+00> : vector<16x64xf32>
    %2 = tpu.matmul %0, %1, %cst {dimension_numbers = #tpu.dot_dimension_numbers<[1], [0], [0], [1], [0, 0, 1, 1], [], []>} : vector<16x32xbf16>, vector<32x64xbf16>, vector<16x64xf32> -> vector<16x64xf32>
    %c0_3 = arith.constant 0 : index
    %c0_4 = arith.constant 0 : index
    %3 = vector.load %arg1[%c0_3, %c0_4] : memref<16x32xbf16, #tpu.memory_space<vmem>>, vector<16x32xbf16>
    %c0_5 = arith.constant 0 : index
    %c0_6 = arith.constant 0 : index
    %4 = vector.load %arg6[%c0_5, %c0_6] : memref<32x64xbf16, #tpu.memory_space<vmem>>, vector<32x64xbf16>
    %cst_7 = arith.constant dense<0.000000e+00> : vector<16x64xf32>
    %5 = tpu.matmul %3, %4, %cst_7 {dimension_numbers = #tpu.dot_dimension_numbers<[1], [0], [0], [1], [0, 0, 1, 1], [], []>} : vector<16x32xbf16>, vector<32x64xbf16>, vector<16x64xf32> -> vector<16x64xf32>
    %6 = arith.addf %2, %5 : vector<16x64xf32>
    %c0_8 = arith.constant 0 : index
    %c0_9 = arith.constant 0 : index
    %7 = vector.load %arg2[%c0_8, %c0_9] : memref<16x64xf32, #tpu.memory_space<vmem>>, vector<16x64xf32>
    %8 = arith.addf %6, %7 : vector<16x64xf32>
    %c0_10 = arith.constant 0 : index
    %c0_11 = arith.constant 0 : index
    %9 = vector.load %arg3[%c0_10, %c0_11] : memref<16x64xf32, #tpu.memory_space<vmem>>, vector<16x64xf32>
    %10 = arith.addf %8, %9 : vector<16x64xf32>
    %11 = arith.mulf %10, %10 : vector<16x64xf32>
    %12 = arith.mulf %10, %11 : vector<16x64xf32>
    %cst_12 = arith.constant 4.471500e-02 : f32
    %13 = vector.broadcast %cst_12 : f32 to vector<16x64xf32>
    %14 = arith.mulf %13, %12 : vector<16x64xf32>
    %15 = arith.addf %10, %14 : vector<16x64xf32>
    %cst_13 = arith.constant 0.797884583 : f32
    %16 = vector.broadcast %cst_13 : f32 to vector<16x64xf32>
    %17 = arith.mulf %16, %15 : vector<16x64xf32>
    %18 = math.tanh %17 : vector<16x64xf32>
    %cst_14 = arith.constant 1.000000e+00 : f32
    %19 = vector.broadcast %cst_14 : f32 to vector<16x64xf32>
    %20 = arith.addf %19, %18 : vector<16x64xf32>
    %cst_15 = arith.constant 5.000000e-01 : f32
    %21 = vector.broadcast %cst_15 : f32 to vector<16x64xf32>
    %22 = arith.mulf %21, %20 : vector<16x64xf32>
    %23 = arith.mulf %10, %22 : vector<16x64xf32>
    %cst_16 = arith.constant 2.500000e+00 : f32
    %24 = vector.broadcast %cst_16 : f32 to vector<16x64xf32>
    %25 = arith.mulf %24, %23 : vector<16x64xf32>
    %26 = arith.mulf %8, %8 : vector<16x64xf32>
    %27 = arith.mulf %8, %26 : vector<16x64xf32>
    %cst_17 = arith.constant 4.471500e-02 : f32
    %28 = vector.broadcast %cst_17 : f32 to vector<16x64xf32>
    %29 = arith.mulf %28, %27 : vector<16x64xf32>
    %30 = arith.addf %8, %29 : vector<16x64xf32>
    %cst_18 = arith.constant 0.797884583 : f32
    %31 = vector.broadcast %cst_18 : f32 to vector<16x64xf32>
    %32 = arith.mulf %31, %30 : vector<16x64xf32>
    %33 = math.tanh %32 : vector<16x64xf32>
    %cst_19 = arith.constant 1.000000e+00 : f32
    %34 = vector.broadcast %cst_19 : f32 to vector<16x64xf32>
    %35 = arith.addf %34, %33 : vector<16x64xf32>
    %cst_20 = arith.constant 5.000000e-01 : f32
    %36 = vector.broadcast %cst_20 : f32 to vector<16x64xf32>
    %37 = arith.mulf %36, %35 : vector<16x64xf32>
    %38 = arith.mulf %8, %37 : vector<16x64xf32>
    %cst_21 = arith.constant -1.500000e+00 : f32
    %39 = vector.broadcast %cst_21 : f32 to vector<16x64xf32>
    %40 = arith.mulf %39, %38 : vector<16x64xf32>
    %41 = arith.addf %25, %40 : vector<16x64xf32>
    %42 = arith.truncf %41 : vector<16x64xf32> to vector<16x64xbf16>
    %c0_22 = arith.constant 0 : index
    %c0_23 = arith.constant 0 : index
    %43 = vector.load %arg7[%c0_22, %c0_23] : memref<64x32xbf16, #tpu.memory_space<vmem>>, vector<64x32xbf16>
    %cst_24 = arith.constant dense<0.000000e+00> : vector<16x32xf32>
    %44 = tpu.matmul %42, %43, %cst_24 {dimension_numbers = #tpu.dot_dimension_numbers<[1], [0], [0], [1], [0, 0, 1, 1], [], []>} : vector<16x64xbf16>, vector<64x32xbf16>, vector<16x32xf32> -> vector<16x32xf32>
    %c0_25 = arith.constant 0 : index
    %c0_26 = arith.constant 0 : index
    %45 = vector.load %arg8[%c0_25, %c0_26] : memref<1x32xf32, #tpu.memory_space<vmem>>, vector<1x32xf32>
    %46 = vector.broadcast %45 : vector<1x32xf32> to vector<16x32xf32>
    %47 = arith.addf %44, %46 : vector<16x32xf32>
    %c0_27 = arith.constant 0 : index
    %c0_28 = arith.constant 0 : index
    %48 = vector.load %arg4[%c0_27, %c0_28] : memref<16x1xf32, #tpu.memory_space<vmem>>, vector<16x1xf32>
    %49 = vector.broadcast %48 : vector<16x1xf32> to vector<16x32xf32>
    %50 = arith.mulf %47, %49 : vector<16x32xf32>
    %c0_29 = arith.constant 0 : index
    %c0_30 = arith.constant 0 : index
    %51 = vector.load %arg9[%c0_29, %c0_30] : memref<16x32xf32, #tpu.memory_space<vmem>>, vector<16x32xf32>
    tpu.vector_store %arg9[%c0_29, %c0_30], %50 {strides = array<i32>} : memref<16x32xf32, #tpu.memory_space<vmem>>, vector<16x32xf32>,
    return
  }
}

</mosaic_0001>

<llo_original>
// kernel: _cfg_apply.1
$region0: #{_cfg_apply.1}
  #allocation0 [shape = 'u32[]', space=smem, size = 0x4, offset = 0x4, fixed_abs, tag = 'smem constant byte address 0x4 - core index']
  #allocation1 [shape = 'u32[72,128]{1,0:T(1,128)}', space=vmem, size = 0x9000, scoped, tag = 'internal scratch']
  %s0 = inlined_call_operand.vmem [shape: bf16[16,32], index: 0, kind: input, shape index: {}]
  %s1 = inlined_call_operand.vmem [shape: bf16[16,32], index: 1, kind: input, shape index: {}]
  %s2 = inlined_call_operand.vmem [shape: f32[16,64], index: 2, kind: input, shape index: {}]
  %s3 = inlined_call_operand.vmem [shape: f32[16,64], index: 3, kind: input, shape index: {}]
  %s4 = inlined_call_operand.vmem [shape: f32[16,1], index: 4, kind: input, shape index: {}]
  %s5 = inlined_call_operand.vmem [shape: bf16[32,64], index: 5, kind: input, shape index: {}]
  %s6 = inlined_call_operand.vmem [shape: bf16[32,64], index: 6, kind: input, shape index: {}]
  %s7 = inlined_call_operand.vmem [shape: bf16[64,32], index: 7, kind: input, shape index: {}]
  %s8 = inlined_call_operand.vmem [shape: f32[1,32], index: 8, kind: input, shape index: {}]
  %s9 = inlined_call_operand.hbm [shape: f32[16,32], index: 9, kind: output, shape index: {}]
  %s10 = sld [smem:[#allocation0]]
  $region46: #{_cfg_apply.1} parent=0
    _
  %s12 = ssub.s32 1, %s10
  %s13 = scalar_select 0, %s12, %s10
  $region1: #{_cfg_apply.1} parent=0
    #allocation2 [shape = 'u8[8192]{0}', space=vmem, size = 0x2000, scoped, tag = 'output window, operand 0, single buffered']
    #allocation3 [shape = 's32[1]{0}', space=sflag, size = 0x4, scoped, tag = 'scoped memory for _cfg_apply.1']
    %14 = vsyncpa [#allocation3], 0
    // Predicated region
    $region2: #{_cfg_apply.1} parent=1 // pred_check
      _
    $region3: #{_cfg_apply.1} parent=1 // pred_check_branch
      %16 = sbr.rel (0) target = $region5
    $region4: #{_cfg_apply.1} parent=1 // pred_region
      _
    $region5: #{_cfg_apply.1} parent=1 // pred_fallthru
      _
    // Predicated region
    $region6: #{_cfg_apply.1} parent=1 // pred_check
      _
    $region7: #{_cfg_apply.1} parent=1 // pred_check_branch
      %18 = sbr.rel (0) target = $region9
    $region8: #{_cfg_apply.1} parent=1 // pred_region
      _
    $region9: #{_cfg_apply.1} parent=1 // pred_fallthru
      _
    // Predicated region
    $region10: #{_cfg_apply.1} parent=1 // pred_check
      _
    $region11: #{_cfg_apply.1} parent=1 // pred_check_branch
      %20 = sbr.rel (0) target = $region13
    $region12: #{_cfg_apply.1} parent=1 // pred_region
      _
    $region13: #{_cfg_apply.1} parent=1 // pred_fallthru
      _
    // Predicated region
    $region14: #{_cfg_apply.1} parent=1 // pred_check
      _
    $region15: #{_cfg_apply.1} parent=1 // pred_check_branch
      %22 = sbr.rel (0) target = $region17
    $region16: #{_cfg_apply.1} parent=1 // pred_region
      _
    $region17: #{_cfg_apply.1} parent=1 // pred_fallthru
      _
    // Predicated region
    $region18: #{_cfg_apply.1} parent=1 // pred_check
      _
    $region19: #{_cfg_apply.1} parent=1 // pred_check_branch
      %24 = sbr.rel (0) target = $region21
    $region20: #{_cfg_apply.1} parent=1 // pred_region
      _
    $region21: #{_cfg_apply.1} parent=1 // pred_fallthru
      _
    // Predicated region
    $region22: #{_cfg_apply.1} parent=1 // pred_check
      _
    $region23: #{_cfg_apply.1} parent=1 // pred_check_branch
      %26 = sbr.rel (0) target = $region25
    $region24: #{_cfg_apply.1} parent=1 // pred_region
      _
    $region25: #{_cfg_apply.1} parent=1 // pred_fallthru
      _
    // Predicated region
    $region26: #{_cfg_apply.1} parent=1 // pred_check
      _
    $region27: #{_cfg_apply.1} parent=1 // pred_check_branch
      %28 = sbr.rel (0) target = $region29
    $region28: #{_cfg_apply.1} parent=1 // pred_region
      _
    $region29: #{_cfg_apply.1} parent=1 // pred_fallthru
      _
    // Predicated region
    $region30: #{_cfg_apply.1} parent=1 // pred_check
      _
    $region31: #{_cfg_apply.1} parent=1 // pred_check_branch
      %30 = sbr.rel (0) target = $region33
    $region32: #{_cfg_apply.1} parent=1 // pred_region
      _
    $region33: #{_cfg_apply.1} parent=1 // pred_fallthru
      _
    // Predicated region
    $region34: #{_cfg_apply.1} parent=1 // pred_check
      _
    $region35: #{_cfg_apply.1} parent=1 // pred_check_branch
      %32 = sbr.rel (0) target = $region37
    $region36: #{_cfg_apply.1} parent=1 // pred_region
      _
    $region37: #{_cfg_apply.1} parent=1 // pred_fallthru
      _
    %v34 = vld [vmem:[%s0] sm:$0xf]
    %v35 = vld [vmem:[%s0 + $0x4] sm:$0xf]
    %v36 = vld [vmem:[%s5] sm:$0xf]
    %v37 = vld [vmem:[%s5 + $0x4] sm:$0xf]
    %v38 = vld [vmem:[%s5 + $0x8] sm:$0xf]
    %v39 = vld [vmem:[%s5 + $0xc] sm:$0xf]
    %v40 = vld [vmem:[%s1] sm:$0xf]
    %v41 = vld [vmem:[%s1 + $0x4] sm:$0xf]
    %v42 = vld [vmem:[%s6] sm:$0xf]
    %v43 = vld [vmem:[%s6 + $0x4] sm:$0xf]
    %v44 = vld [vmem:[%s6 + $0x8] sm:$0xf]
    %v45 = vld [vmem:[%s6 + $0xc] sm:$0xf]
    %v48 = vunpack.c.l.b16 %v40
    %v49 = vunpack.c.l.b16 %v41
    %v50 = vpack.c.b16 %v49, %v48
    %v55 = vunpack.c.l.b16 %v42
    %v56 = vunpack.c.l.b16 %v43
    %v57 = vunpack.c.l.b16 %v44
    %v58 = vunpack.c.l.b16 %v45
    %v59 = vpack.c.b16 %v56, %v55
    %v60 = vpack.c.b16 %v58, %v57
    %vm63 = vcmask 261120
    %v65 = vsel %vm63, %v50, 0
    %67 = vmatpush.bf16.msra.mxu0 0
    %68 = vmatpush.bf16.msra.mxu0 0
    %69 = vmatpush.bf16.msra.mxu0 0
    %70 = vmatpush.bf16.msra.mxu0 0
    %71 = vmatpush.bf16.msra.mxu0 0
    %72 = vmatpush.bf16.msra.mxu0 0
    %73 = vmatpush.bf16.msra.mxu0 %v60
    %74 = vmatpush.bf16.msra.mxu0 %v59
    %75 = vmatmul.bf16.gmra.mxu0 %v65
    %v76 = vpop.f32.mrf.mxu0
    %v77 = vadd.f32 0.0, %v76
    %v78 = vpop.f32.mrf.mxu0
    %v79 = vadd.f32 0.0, %v78
    %80 = vdwg.mxu0
    %v83 = vunpack.c.l.b16 %v34
    %v84 = vunpack.c.l.b16 %v35
    %v85 = vpack.c.b16 %v84, %v83
    %v90 = vunpack.c.l.b16 %v36
    %v91 = vunpack.c.l.b16 %v37
    %v92 = vunpack.c.l.b16 %v38
    %v93 = vunpack.c.l.b16 %v39
    %v94 = vpack.c.b16 %v91, %v90
    %v95 = vpack.c.b16 %v93, %v92
    %v99 = vsel %vm63, %v85, 0
    %101 = vmatpush.bf16.msra.mxu0 0
    %102 = vmatpush.bf16.msra.mxu0 0
    %103 = vmatpush.bf16.msra.mxu0 0
    %104 = vmatpush.bf16.msra.mxu0 0
    %105 = vmatpush.bf16.msra.mxu0 0
    %106 = vmatpush.bf16.msra.mxu0 0
    %107 = vmatpush.bf16.msra.mxu0 %v95
    %108 = vmatpush.bf16.msra.mxu0 %v94
    %109 = vmatmul.bf16.gmra.mxu0 %v99
    %v110 = vpop.f32.mrf.mxu0
    %v111 = vadd.f32 %v77, %v110
    %v112 = vpop.f32.mrf.mxu0
    %v113 = vadd.f32 %v79, %v112
    %114 = vdwg.mxu0
    %v115 = vld [vmem:[%s2] sm:$0xff]
    %v116 = vld [vmem:[%s2 + $0x8] sm:$0xff]
    %v117 = vadd.f32 %v111, %v115
    %v118 = vadd.f32 %v113, %v116
    %v119 = vld [vmem:[%s3] sm:$0xff]
    %v120 = vld [vmem:[%s3 + $0x8] sm:$0xff]
    %v121 = vadd.f32 %v117, %v119
    %v122 = vadd.f32 %v118, %v120
    %v123 = vmul.f32 %v121, %v121
    %v124 = vmul.f32 %v122, %v122
    %v125 = vmul.f32 %v121, %v123
    %v126 = vmul.f32 %v122, %v124
    %v127 = vmul.f32 %v125, 0.044715
    %v128 = vmul.f32 %v126, 0.044715
    %v129 = vadd.f32 %v121, %v127
    %v130 = vadd.f32 %v122, %v128
    %v131 = vmul.f32 %v129, 0.7978846
    %v132 = vmul.f32 %v130, 0.7978846
    %v133 = vtanh.pop %v131
    %v134 = vtanh.pop %v132
    %v135 = vadd.f32 %v133, 1.0
    %v136 = vadd.f32 %v134, 1.0
    %v137 = vmul.f32 %v135, 0.5
    %v138 = vmul.f32 %v136, 0.5
    %v139 = vmul.f32 %v121, %v137
    %v140 = vmul.f32 %v122, %v138
    %v141 = vmul.f32 %v139, 2.5
    %v142 = vmul.f32 %v140, 2.5
    %v143 = vmul.f32 %v117, %v117
    %v144 = vmul.f32 %v118, %v118
    %v145 = vmul.f32 %v117, %v143
    %v146 = vmul.f32 %v118, %v144
    %v147 = vmul.f32 %v145, 0.044715
    %v148 = vmul.f32 %v146, 0.044715
    %v149 = vadd.f32 %v117, %v147
    %v150 = vadd.f32 %v118, %v148
    %v151 = vmul.f32 %v149, 0.7978846
    %v152 = vmul.f32 %v150, 0.7978846
    %v153 = vtanh.pop %v151
    %v154 = vtanh.pop %v152
    %v155 = vadd.f32 %v153, 1.0
    %v156 = vadd.f32 %v154, 1.0
    %v157 = vmul.f32 %v155, 0.5
    %v158 = vmul.f32 %v156, 0.5
    %v159 = vmul.f32 %v117, %v157
    %v160 = vmul.f32 %v118, %v158
    %v161 = vmul.f32 %v159, -1.5
    %v162 = vmul.f32 %v160, -1.5
    %v163 = vadd.f32 %v141, %v161
    %v164 = vadd.f32 %v142, %v162
    %v165 = vpack.c.bf16 %v164, %v163
    %v166 = vld [vmem:[%s7] sm:$0xf]
    %v167 = vld [vmem:[%s7 + $0x4] sm:$0xf]
    %v168 = vld [vmem:[%s7 + $0x8] sm:$0xf]
    %v169 = vld [vmem:[%s7 + $0xc] sm:$0xf]
    %v170 = vld [vmem:[%s7 + $0x10] sm:$0xf]
    %v171 = vld [vmem:[%s7 + $0x14] sm:$0xf]
    %v172 = vld [vmem:[%s7 + $0x18] sm:$0xf]
    %v173 = vld [vmem:[%s7 + $0x1c] sm:$0xf]
    %v174 = vld [vmem:[%s8] sm:$0x1]
    %v176 = vperm.slane %v174, 0
    %v186 = vunpack.c.l.b16 %v166
    %v187 = vunpack.c.l.b16 %v167
    %v188 = vunpack.c.l.b16 %v168
    %v189 = vunpack.c.l.b16 %v169
    %v190 = vunpack.c.l.b16 %v170
    %v191 = vunpack.c.l.b16 %v171
    %v192 = vunpack.c.l.b16 %v172
    %v193 = vunpack.c.l.b16 %v173
    %v194 = vpack.c.b16 %v187, %v186
    %v195 = vpack.c.b16 %v189, %v188
    %v196 = vpack.c.b16 %v191, %v190
    %v197 = vpack.c.b16 %v193, %v192
    %vm202 = vcmask 523264
    %v204 = vsel %vm202, %v165, 0
    %206 = vmatpush.bf16.msra.mxu0 0
    %207 = vmatpush.bf16.msra.mxu0 0
    %208 = vmatpush.bf16.msra.mxu0 0
    %209 = vmatpush.bf16.msra.mxu0 0
    %210 = vmatpush.bf16.msra.mxu0 %v197
    %211 = vmatpush.bf16.msra.mxu0 %v196
    %212 = vmatpush.bf16.msra.mxu0 %v195
    %213 = vmatpush.bf16.msra.mxu0 %v194
    %214 = vmatmul.bf16.gmra.mxu0 %v204
    %v215 = vpop.f32.mrf.mxu0
    %v216 = vadd.f32 %v176, %v215
    %v217 = vpop.f32.mrf.mxu0
    %v218 = vadd.f32 %v176, %v217
    %219 = vdwg.mxu0
    %v220 = vld [vmem:[%s4] sm:$0xff]
    %v221 = vld [vmem:[%s4 + $0x8] sm:$0xff]
    %223 = vset.pattern.permute.xlu0 0
    %224 = vperm.xlu0 %223, %v220
    %v225 = vpop.permute.xlu0 %224
    %228 = vset.pattern.permute.xlu0 0
    %229 = vperm.xlu0 %228, %v221
    %v230 = vpop.permute.xlu0 %229
    %v232 = vmul.f32 %v216, %v225
    %v233 = vmul.f32 %v218, %v230
    %234 = vst.msk [vmem:[#allocation2] sm:$0xff] %vm63, %v232
    %235 = vst.msk [vmem:[#allocation2 + $0x8] sm:$0xff] %vm63, %v233
    // Predicated region
    $region38: #{_cfg_apply.1} parent=1 // pred_check
      _
    $region39: #{_cfg_apply.1} parent=1 // pred_check_branch
      %237 = sbr.rel (0) target = $region41
    $region40: #{_cfg_apply.1} parent=1 // pred_region
      %239 = vsyncadd [#allocation3], 0
      %s240 = sshll.u32 [#allocation2], 4
      %s241 = int_to_ptr.vmem [resolvable:$true] %s240
      %s242 = sshll.u32 %s9, 4
      %s243 = int_to_ptr.hbm [resolvable:$true] %s242
      %248 = dma.vmem_to_hbm [thread:$0]  %s241, 256, %s243, [#allocation3], 128, 128, 8
    $region41: #{_cfg_apply.1} parent=1 // pred_fallthru
      _
    // Predicated region
    $region42: #{_cfg_apply.1} parent=1 // pred_check
      _
    $region43: #{_cfg_apply.1} parent=1 // pred_check_branch
      %250 = sbr.rel (0) target = $region45
    $region44: #{_cfg_apply.1} parent=1 // pred_region
      %252 = dma.done [#allocation3], 256
    $region45: #{_cfg_apply.1} parent=1 // pred_fallthru
      _
    %253 = vsyncpa [#allocation3], 1

</llo_original>
